<compile_context>
chip_gen: v5e
topology: v5e:2x2
jax: 0.10.0
libtpu: 0.0.40
codegen_flags: <defaults>
</compile_context>

<pallas_src>
import functools

import jax
import jax.numpy as jnp
from jax.experimental import pallas as pl
from jax.experimental.pallas import tpu as pltpu

PAD = 128  # lane-pad width for all tail feature dims and the output slab


def interhand_kernel(
    x_ref,       # (C, TILE_HW)        image tokens, tokens on the 128-lane axis
    wconvT_ref,  # (HID_PAD, C)        1x1 conv-stem weight (transposed)
    bconv_ref,   # (HID_PAD, 1)        1x1 conv-stem bias
    wproj_ref,   # (HID_PAD, PAD)      backbone head Linear (lane-padded)
    vec_ref,     # (8, PAD)            rows: 0 bproj, 1 bfc2, 2 br, 3 bc, 4 mean
    mat_ref,     # (4*PAD, PAD)        rows: [wfc2; wrf; wrp; wc]
    out_ref,     # (2, PAD)            row 0 = pred_params, row 1 = hand_class
    acc_ref,     # scratch (HID_PAD, 1) f32 -- GAP partial sums
    *,
    hw_total,    # static: H*W (for the mean divide)
):
    s = pl.program_id(1)

    # ---- init accumulator at the first HW tile of each batch element ----
    @pl.when(s == 0)
    def _():
        acc_ref[...] = jnp.zeros_like(acc_ref)

    # ---- streaming stem on the MXU: ReLU(W x + b), reduced over tokens ----
    # K = C = 4 underutilizes the MXU, but the MXU slot is otherwise idle and
    # this removes ~8 VALU ops/element from the steady-state bundle.
    x = x_ref[...]                                                   # (C, TILE_HW)
    h = jnp.dot(wconvT_ref[...], x, preferred_element_type=jnp.float32)
    h = h + bconv_ref[...]                                           # (HID_PAD, TILE_HW)
    # Per-tile lane reduce (XLU) into a tiny persistent accumulator.
    acc_ref[...] += jnp.sum(jnp.maximum(h, 0.0), axis=1, keepdims=True)

    # ---- finalize: GAP + projection + feat_encoder + regressor + classifier ----
    @pl.when(s == pl.num_programs(1) - 1)
    def _():
        inv_hw = 1.0 / float(hw_total)
        pooled = acc_ref[...] * inv_hw                               # (HID_PAD, 1)

        # main_feat = pooled_row @ wproj + bproj, without an explicit transpose
        main_feat = (
            jnp.sum(pooled * wproj_ref[...], axis=0, keepdims=True)
            + vec_ref[0:1, :]                                        # bproj
        )                                                            # (1, PAD)

        # feat_encoder: ReLU -> Linear -> ReLU
        f = jnp.maximum(main_feat, 0.0)
        f = (
            jnp.dot(f, mat_ref[0:PAD, :], preferred_element_type=jnp.float32)
            + vec_ref[1:2, :]                                        # bfc2
        )
        feat = jnp.maximum(f, 0.0)                                   # (1, PAD)

        # iterative regressor (3 refinement steps):
        # cat([feat, pred]) @ Wr + br == feat @ Wrf + pred @ Wrp + br
        feat_term = (
            jnp.dot(feat, mat_ref[PAD:2 * PAD, :],
                    preferred_element_type=jnp.float32)
            + vec_ref[2:3, :]                                        # br
        )                                                            # (1, PAD)
        pred = vec_ref[4:5, :]                                       # mean_params
        for _ in range(3):
            pred = pred + feat_term + jnp.dot(
                pred, mat_ref[2 * PAD:3 * PAD, :],
                preferred_element_type=jnp.float32)

        # hand classifier
        logits = (
            jnp.dot(feat, mat_ref[3 * PAD:4 * PAD, :],
                    preferred_element_type=jnp.float32)
            + vec_ref[3:4, :]                                        # bc
        )
        cls = jax.nn.sigmoid(logits)                                 # (1, PAD)

        # single packed lane-dense store (no per-row masked stores)
        out_ref[...] = jnp.concatenate([pred, cls], axis=0)


def _pad2(a, rows, cols):
    return jnp.pad(a, ((0, rows - a.shape[0]), (0, cols - a.shape[1])))


def _pick_tile_hw(hw, requested):
    """Largest lane-aligned (mult of 128) divisor of hw that is <= requested,
    or hw itself when hw <= requested."""
    if hw <= requested:
        return hw
    t = requested - (requested % 128)
    while t >= 128:
        if hw % t == 0:
            return t
        t -= 128
    return hw  # fall back to a single full-extent step


def interhand_forward(x_nchw, params, *, tile_hw=8192):
    N, C, H, W = x_nchw.shape
    HW = H * W
    tile_hw = _pick_tile_hw(HW, tile_hw)
    assert HW % tile_hw == 0, "H*W must be divisible by the HW tile"
    assert tile_hw == HW or tile_hw % 128 == 0, "HW tile must be lane-aligned"

    HID = params["wconv"].shape[1]
    P = params["mean_params"].shape[1]
    HID_PAD = ((HID + 7) // 8) * 8

    # NCHW -> (N, C, H*W): free view, tokens land on the 128-lane axis.
    x = x_nchw.reshape(N, C, HW)
    # Note: x.astype(jnp.bfloat16) halves the only streamed HBM traffic
    # (MXU still accumulates f32); kept f32 here to hold the 1e-4 tolerance.

    # ---- consolidated, lane-padded resident weight slabs (wrapper-side) ----
    wconvT = _pad2(params["wconv"].T, HID_PAD, C)            # (HID_PAD, C)
    bconv = _pad2(params["bconv"].T, HID_PAD, 1)             # (HID_PAD, 1)
    wproj = _pad2(params["wproj"], HID_PAD, PAD)             # (HID_PAD, PAD)
    vec_slab = jnp.concatenate(                              # (8, PAD) one vreg
        [
            _pad2(params["bproj"], 1, PAD),
            _pad2(params["bfc2"], 1, PAD),
            _pad2(params["br"], 1, PAD),
            _pad2(params["bc"], 1, PAD),
            _pad2(params["mean_params"], 1, PAD),
            jnp.zeros((3, PAD), jnp.float32),
        ],
        axis=0,
    )
    mat_slab = jnp.concatenate(                              # (4*PAD, PAD)
        [
            _pad2(params["wfc2"], PAD, PAD),
            _pad2(params["wrf"], PAD, PAD),
            _pad2(params["wrp"], PAD, PAD),
            _pad2(params["wc"], PAD, PAD),
        ],
        axis=0,
    )
    weights = [wconvT, bconv, wproj, vec_slab, mat_slab]

    grid = (N, HW // tile_hw)
    x_spec = pl.BlockSpec((None, C, tile_hw), lambda n, s: (n, 0, s))
    # Weights: full-extent blocks, constant index_map -> resident across grid.
    weight_specs = [pl.BlockSpec(w.shape, lambda n, s: (0, 0)) for w in weights]
    out_spec = pl.BlockSpec((None, 2, PAD), lambda n, s: (n, 0, 0))

    weight_bytes = sum(int(w.size) for w in weights) * 4
    cost = pl.CostEstimate(
        flops=2 * N * HW * C * HID_PAD + 2 * N * HW * HID_PAD
        + N * (2 * HID_PAD * PAD + 10 * PAD * PAD),
        transcendentals=N * PAD,
        bytes_accessed=int(x.size) * 4 + weight_bytes + N * 2 * PAD * 4,
    )

    out = pl.pallas_call(
        functools.partial(interhand_kernel, hw_total=HW),
        out_shape=jax.ShapeDtypeStruct((N, 2, PAD), jnp.float32),
        grid_spec=pltpu.PrefetchScalarGridSpec(
            num_scalar_prefetch=0,
            grid=grid,
            in_specs=[x_spec] + weight_specs,
            out_specs=out_spec,
            # accumulator is (HID_PAD, 1): VMEM footprint no longer scales with
            # tile_hw, so large tiles fit v7x's 64 MiB budget too.
            scratch_shapes=[pltpu.VMEM((HID_PAD, 1), jnp.float32)],
        ),
        compiler_params=pltpu.CompilerParams(
            dimension_semantics=("parallel", "arbitrary"),
            vmem_limit_bytes=32 * 1024 * 1024,
        ),
        cost_estimate=cost,
    )(x, *weights)

    pred_params = out[:, 0, :P]
    hand_class = out[:, 1, :2]
    return pred_params, hand_class


def reference_forward(x_nchw, p):
    """Pure-JAX reference for validation (unpadded math)."""
    N, C, H, W = x_nchw.shape
    x = jnp.transpose(x_nchw, (0, 2, 3, 1)).reshape(N, H * W, C)
    h = jnp.maximum(jnp.einsum("nsc,ch->nsh", x, p["wconv"]) + p["bconv"], 0.0)
    pooled = jnp.mean(h, axis=1)
    main_feat = pooled @ p["wproj"] + p["bproj"]
    feat = jnp.maximum(jnp.maximum(main_feat, 0.0) @ p["wfc2"] + p["bfc2"], 0.0)
    pred = jnp.broadcast_to(p["mean_params"], (N, p["mean_params"].shape[1]))
    for _ in range(3):
        out = jnp.concatenate([feat, pred], axis=1) @ jnp.concatenate(
            [p["wrf"], p["wrp"]], axis=0
        ) + p["br"]
        pred = pred + out
    cls = jax.nn.sigmoid(feat @ p["wc"] + p["bc"])
    return pred, cls


def make_params(key, C=4, HID=32, FEAT=32, P=16):
    ks = jax.random.split(key, 12)
    s = 0.05
    return {
        "wconv": jax.random.normal(ks[0], (C, HID), jnp.float32) * s,
        "bconv": jax.random.normal(ks[1], (1, HID), jnp.float32) * s,
        "wproj": jax.random.normal(ks[2], (HID, FEAT), jnp.float32) * s,
        "bproj": jax.random.normal(ks[3], (1, FEAT), jnp.float32) * s,
        "wfc2": jax.random.normal(ks[4], (FEAT, FEAT), jnp.float32) * s,
        "bfc2": jax.random.normal(ks[5], (1, FEAT), jnp.float32) * s,
        "wrf": jax.random.normal(ks[6], (FEAT, P), jnp.float32) * s,
        "wrp": jax.random.normal(ks[7], (P, P), jnp.float32) * s,
        "br": jax.random.normal(ks[8], (1, P), jnp.float32) * s,
        "wc": jax.random.normal(ks[9], (FEAT, 2), jnp.float32) * s,
        "bc": jax.random.normal(ks[10], (1, 2), jnp.float32) * s,
        "mean_params": jax.random.normal(ks[11], (1, P), jnp.float32) * s,
    }


if __name__ == "__main__":
    key = jax.random.PRNGKey(0)
    k_x, k_p = jax.random.split(key)
    # small shapes: batch=2, channels=4, spatial=16x16, hidden/feat=32, params_dim=16
    x = jax.random.normal(k_x, (2, 4, 16, 16), jnp.float32)
    params = make_params(k_p)

    ref_pred, ref_cls = reference_forward(x, params)

    # Default (large-tile) path: tile_hw clamps to full H*W -> grid=(2, 1).
    pred_params, hand_class = interhand_forward(x, params)
    jax.block_until_ready((pred_params, hand_class))
    assert jnp.allclose(pred_params, ref_pred, rtol=1e-4, atol=1e-4)
    assert jnp.allclose(hand_class, ref_cls, rtol=1e-4, atol=1e-4)

    # Multi-step path: tile_hw=128 -> grid=(2, 2) exercises init/accumulate/finalize.
    pred_params2, hand_class2 = interhand_forward(x, params, tile_hw=128)
    jax.block_until_ready((pred_params2, hand_class2))
    assert jnp.allclose(pred_params2, ref_pred, rtol=1e-4, atol=1e-4)
    assert jnp.allclose(hand_class2, ref_cls, rtol=1e-4, atol=1e-4)

    print("KERNEL_OK")
</pallas_src>

<mosaic_0001>
module attributes {stable_mosaic.version = 11 : i64} {
  func.func @interhand_kernel(%arg0: i32, %arg1: i32, %arg2: memref<1x4x256xf32, #tpu.memory_space<vmem>>, %arg3: memref<32x4xf32, #tpu.memory_space<vmem>>, %arg4: memref<32x1xf32, #tpu.memory_space<vmem>>, %arg5: memref<32x128xf32, #tpu.memory_space<vmem>>, %arg6: memref<8x128xf32, #tpu.memory_space<vmem>>, %arg7: memref<512x128xf32, #tpu.memory_space<vmem>>, %arg8: memref<1x2x128xf32, #tpu.memory_space<vmem>>, %arg9: memref<32x1xf32, #tpu.memory_space<vmem>>) attributes {dimension_semantics = [#tpu.dimension_semantics<parallel>, #tpu.dimension_semantics<arbitrary>], iteration_bounds = array<i64: 2, 1>, scalar_prefetch = 0 : i64, scratch_operands = 1 : i64, tpu.core_type = #tpu.core_type<tc>, window_params = [{transform_indices = @transform_0, window_bounds = array<i64: 1, 4, 256>}, {pipeline_mode = #tpu.pipeline_mode<synchronous>, transform_indices = @transform_1, window_bounds = array<i64: 32, 4>}, {pipeline_mode = #tpu.pipeline_mode<synchronous>, transform_indices = @transform_2, window_bounds = array<i64: 32, 1>}, {pipeline_mode = #tpu.pipeline_mode<synchronous>, transform_indices = @transform_3, window_bounds = array<i64: 32, 128>}, {pipeline_mode = #tpu.pipeline_mode<synchronous>, transform_indices = @transform_4, window_bounds = array<i64: 8, 128>}, {pipeline_mode = #tpu.pipeline_mode<synchronous>, transform_indices = @transform_5, window_bounds = array<i64: 512, 128>}, {transform_indices = @transform_6, window_bounds = array<i64: 1, 2, 128>}]} {
    %c0_i32 = arith.constant 0 : i32
    %0 = arith.cmpi eq, %arg1, %c0_i32 : i32
    %1 = arith.extui %0 : i1 to i32
    %c0_i32_0 = arith.constant 0 : i32
    %2 = arith.cmpi ne, %1, %c0_i32_0 : i32
    scf.if %2 {
      %cst_15 = arith.constant 0.000000e+00 : f32
      %20 = vector.broadcast %cst_15 : f32 to vector<32x1xf32>
      %c0_16 = arith.constant 0 : index
      %c0_17 = arith.constant 0 : index
      %21 = vector.load %arg9[%c0_16, %c0_17] : memref<32x1xf32, #tpu.memory_space<vmem>>, vector<32x1xf32>
      tpu.vector_store %arg9[%c0_16, %c0_17], %20 {strides = array<i32>} : memref<32x1xf32, #tpu.memory_space<vmem>>, vector<32x1xf32>,
    } else {
    }
    %c0 = arith.constant 0 : index
    %c0_1 = arith.constant 0 : index
    %c0_2 = arith.constant 0 : index
    %3 = vector.load %arg2[%c0, %c0_1, %c0_2] : memref<1x4x256xf32, #tpu.memory_space<vmem>>, vector<1x4x256xf32>
    %4 = vector.shape_cast %3 : vector<1x4x256xf32> to vector<4x256xf32>
    %c0_3 = arith.constant 0 : index
    %c0_4 = arith.constant 0 : index
    %5 = vector.load %arg3[%c0_3, %c0_4] : memref<32x4xf32, #tpu.memory_space<vmem>>, vector<32x4xf32>
    %cst = arith.constant dense<0.000000e+00> : vector<32x256xf32>
    %6 = tpu.matmul %5, %4, %cst {dimension_numbers = #tpu.dot_dimension_numbers<[1], [0], [0], [1], [0, 0, 1, 1], [], []>} : vector<32x4xf32>, vector<4x256xf32>, vector<32x256xf32> -> vector<32x256xf32>
    %c0_5 = arith.constant 0 : index
    %c0_6 = arith.constant 0 : index
    %7 = vector.load %arg4[%c0_5, %c0_6] : memref<32x1xf32, #tpu.memory_space<vmem>>, vector<32x1xf32>
    %8 = vector.broadcast %7 : vector<32x1xf32> to vector<32x256xf32>
    %9 = arith.addf %6, %8 : vector<32x256xf32>
    %c0_7 = arith.constant 0 : index
    %c0_8 = arith.constant 0 : index
    %10 = vector.load %arg9[%c0_7, %c0_8] : memref<32x1xf32, #tpu.memory_space<vmem>>, vector<32x1xf32>
    %cst_9 = arith.constant 0.000000e+00 : f32
    %11 = vector.broadcast %cst_9 : f32 to vector<32x256xf32>
    %12 = arith.maximumf %9, %11 : vector<32x256xf32>
    %cst_10 = arith.constant dense<0.000000e+00> : vector<32xf32>
    %13 = vector.multi_reduction <add>, %12, %cst_10 [1] : vector<32x256xf32> to vector<32xf32>
    %14 = vector.shape_cast %13 : vector<32xf32> to vector<32x1xf32>
    %15 = arith.addf %10, %14 : vector<32x1xf32>
    %c0_11 = arith.constant 0 : index
    %c0_12 = arith.constant 0 : index
    %16 = vector.load %arg9[%c0_11, %c0_12] : memref<32x1xf32, #tpu.memory_space<vmem>>, vector<32x1xf32>
    tpu.vector_store %arg9[%c0_11, %c0_12], %15 {strides = array<i32>} : memref<32x1xf32, #tpu.memory_space<vmem>>, vector<32x1xf32>,
    %c0_i32_13 = arith.constant 0 : i32
    %17 = arith.cmpi eq, %arg1, %c0_i32_13 : i32
    %18 = arith.extui %17 : i1 to i32
    %c0_i32_14 = arith.constant 0 : i32
    %19 = arith.cmpi ne, %18, %c0_i32_14 : i32
    scf.if %19 {
      %c0_15 = arith.constant 0 : index
      %c0_16 = arith.constant 0 : index
      %20 = vector.load %arg9[%c0_15, %c0_16] : memref<32x1xf32, #tpu.memory_space<vmem>>, vector<32x1xf32>
      %cst_17 = arith.constant 3.906250e-03 : f32
      %21 = vector.broadcast %cst_17 : f32 to vector<32x1xf32>
      %22 = arith.mulf %20, %21 : vector<32x1xf32>
      %c0_18 = arith.constant 0 : index
      %c0_19 = arith.constant 0 : index
      %23 = vector.load %arg5[%c0_18, %c0_19] : memref<32x128xf32, #tpu.memory_space<vmem>>, vector<32x128xf32>
      %24 = vector.broadcast %22 : vector<32x1xf32> to vector<32x128xf32>
      %25 = arith.mulf %24, %23 : vector<32x128xf32>
      %cst_20 = arith.constant dense<0.000000e+00> : vector<128xf32>
      %26 = vector.multi_reduction <add>, %25, %cst_20 [0] : vector<32x128xf32> to vector<128xf32>
      %27 = vector.shape_cast %26 : vector<128xf32> to vector<1x128xf32>
      %c0_21 = arith.constant 0 : index
      %c0_22 = arith.constant 0 : index
      %28 = vector.load %arg6[%c0_21, %c0_22] : memref<8x128xf32, #tpu.memory_space<vmem>>, vector<1x128xf32>
      %29 = arith.addf %27, %28 : vector<1x128xf32>
      %cst_23 = arith.constant 0.000000e+00 : f32
      %30 = vector.broadcast %cst_23 : f32 to vector<1x128xf32>
      %31 = arith.maximumf %29, %30 : vector<1x128xf32>
      %c0_24 = arith.constant 0 : index
      %c0_25 = arith.constant 0 : index
      %32 = vector.load %arg7[%c0_24, %c0_25] : memref<512x128xf32, #tpu.memory_space<vmem>>, vector<128x128xf32>
      %cst_26 = arith.constant dense<0.000000e+00> : vector<1x128xf32>
      %33 = tpu.matmul %31, %32, %cst_26 {dimension_numbers = #tpu.dot_dimension_numbers<[1], [0], [0], [1], [0, 0, 1, 1], [], []>} : vector<1x128xf32>, vector<128x128xf32>, vector<1x128xf32> -> vector<1x128xf32>
      %c1 = arith.constant 1 : index
      %c0_27 = arith.constant 0 : index
      %34 = vector.load %arg6[%c1, %c0_27] : memref<8x128xf32, #tpu.memory_space<vmem>>, vector<1x128xf32>
      %35 = arith.addf %33, %34 : vector<1x128xf32>
      %cst_28 = arith.constant 0.000000e+00 : f32
      %36 = vector.broadcast %cst_28 : f32 to vector<1x128xf32>
      %37 = arith.maximumf %35, %36 : vector<1x128xf32>
      %c128 = arith.constant 128 : index
      %c0_29 = arith.constant 0 : index
      %38 = vector.load %arg7[%c128, %c0_29] : memref<512x128xf32, #tpu.memory_space<vmem>>, vector<128x128xf32>
      %cst_30 = arith.constant dense<0.000000e+00> : vector<1x128xf32>
      %39 = tpu.matmul %37, %38, %cst_30 {dimension_numbers = #tpu.dot_dimension_numbers<[1], [0], [0], [1], [0, 0, 1, 1], [], []>} : vector<1x128xf32>, vector<128x128xf32>, vector<1x128xf32> -> vector<1x128xf32>
      %c2 = arith.constant 2 : index
      %c0_31 = arith.constant 0 : index
      %40 = vector.load %arg6[%c2, %c0_31] : memref<8x128xf32, #tpu.memory_space<vmem>>, vector<1x128xf32>
      %41 = arith.addf %39, %40 : vector<1x128xf32>
      %c4 = arith.constant 4 : index
      %c0_32 = arith.constant 0 : index
      %42 = vector.load %arg6[%c4, %c0_32] : memref<8x128xf32, #tpu.memory_space<vmem>>, vector<1x128xf32>
      %43 = arith.addf %42, %41 : vector<1x128xf32>
      %c256 = arith.constant 256 : index
      %c0_33 = arith.constant 0 : index
      %44 = vector.load %arg7[%c256, %c0_33] : memref<512x128xf32, #tpu.memory_space<vmem>>, vector<128x128xf32>
      %cst_34 = arith.constant dense<0.000000e+00> : vector<1x128xf32>
      %45 = tpu.matmul %42, %44, %cst_34 {dimension_numbers = #tpu.dot_dimension_numbers<[1], [0], [0], [1], [0, 0, 1, 1], [], []>} : vector<1x128xf32>, vector<128x128xf32>, vector<1x128xf32> -> vector<1x128xf32>
      %46 = arith.addf %43, %45 : vector<1x128xf32>
      %47 = arith.addf %46, %41 : vector<1x128xf32>
      %c256_35 = arith.constant 256 : index
      %c0_36 = arith.constant 0 : index
      %48 = vector.load %arg7[%c256_35, %c0_36] : memref<512x128xf32, #tpu.memory_space<vmem>>, vector<128x128xf32>
      %cst_37 = arith.constant dense<0.000000e+00> : vector<1x128xf32>
      %49 = tpu.matmul %46, %48, %cst_37 {dimension_numbers = #tpu.dot_dimension_numbers<[1], [0], [0], [1], [0, 0, 1, 1], [], []>} : vector<1x128xf32>, vector<128x128xf32>, vector<1x128xf32> -> vector<1x128xf32>
      %50 = arith.addf %47, %49 : vector<1x128xf32>
      %51 = arith.addf %50, %41 : vector<1x128xf32>
      %c256_38 = arith.constant 256 : index
      %c0_39 = arith.constant 0 : index
      %52 = vector.load %arg7[%c256_38, %c0_39] : memref<512x128xf32, #tpu.memory_space<vmem>>, vector<128x128xf32>
      %cst_40 = arith.constant dense<0.000000e+00> : vector<1x128xf32>
      %53 = tpu.matmul %50, %52, %cst_40 {dimension_numbers = #tpu.dot_dimension_numbers<[1], [0], [0], [1], [0, 0, 1, 1], [], []>} : vector<1x128xf32>, vector<128x128xf32>, vector<1x128xf32> -> vector<1x128xf32>
      %54 = arith.addf %51, %53 : vector<1x128xf32>
      %c384 = arith.constant 384 : index
      %c0_41 = arith.constant 0 : index
      %55 = vector.load %arg7[%c384, %c0_41] : memref<512x128xf32, #tpu.memory_space<vmem>>, vector<128x128xf32>
      %cst_42 = arith.constant dense<0.000000e+00> : vector<1x128xf32>
      %56 = tpu.matmul %37, %55, %cst_42 {dimension_numbers = #tpu.dot_dimension_numbers<[1], [0], [0], [1], [0, 0, 1, 1], [], []>} : vector<1x128xf32>, vector<128x128xf32>, vector<1x128xf32> -> vector<1x128xf32>
      %c3 = arith.constant 3 : index
      %c0_43 = arith.constant 0 : index
      %57 = vector.load %arg6[%c3, %c0_43] : memref<8x128xf32, #tpu.memory_space<vmem>>, vector<1x128xf32>
      %58 = arith.addf %56, %57 : vector<1x128xf32>
      %59 = arith.negf %58 : vector<1x128xf32>
      %60 = math.exp %59 : vector<1x128xf32>
      %cst_44 = arith.constant 1.000000e+00 : f32
      %61 = vector.broadcast %cst_44 : f32 to vector<1x128xf32>
      %62 = arith.addf %61, %60 : vector<1x128xf32>
      %63 = arith.divf %61, %62 : vector<1x128xf32>
      %64 = tpu.concatenate %54, %63 in 0 : vector<1x128xf32>, vector<1x128xf32> -> vector<2x128xf32>
      %c0_45 = arith.constant 0 : index
      %c0_46 = arith.constant 0 : index
      %c0_47 = arith.constant 0 : index
      %65 = vector.load %arg8[%c0_45, %c0_46, %c0_47] : memref<1x2x128xf32, #tpu.memory_space<vmem>>, vector<1x2x128xf32>
      %66 = vector.shape_cast %65 : vector<1x2x128xf32> to vector<2x128xf32>
      %67 = vector.shape_cast %64 : vector<2x128xf32> to vector<1x2x128xf32>
      tpu.vector_store %arg8[%c0_45, %c0_46, %c0_47], %67 {strides = array<i32>} : memref<1x2x128xf32, #tpu.memory_space<vmem>>, vector<1x2x128xf32>,
    } else {
    }
    return
  }
  func.func @transform_0(%arg0: i32, %arg1: i32) -> (i32, i32, i32) {
    %c0_i32 = arith.constant 0 : i32
    %c0_i32_0 = arith.constant 0 : i32
    return %arg0, %c0_i32, %arg1 : i32, i32, i32
  }
  func.func @transform_1(%arg0: i32, %arg1: i32) -> (i32, i32) {
    %c0_i32 = arith.constant 0 : i32
    %c0_i32_0 = arith.constant 0 : i32
    %c0_i32_1 = arith.constant 0 : i32
    return %c0_i32, %c0_i32_0 : i32, i32
  }
  func.func @transform_2(%arg0: i32, %arg1: i32) -> (i32, i32) {
    %c0_i32 = arith.constant 0 : i32
    %c0_i32_0 = arith.constant 0 : i32
    %c0_i32_1 = arith.constant 0 : i32
    return %c0_i32, %c0_i32_0 : i32, i32
  }
  func.func @transform_3(%arg0: i32, %arg1: i32) -> (i32, i32) {
    %c0_i32 = arith.constant 0 : i32
    %c0_i32_0 = arith.constant 0 : i32
    %c0_i32_1 = arith.constant 0 : i32
    return %c0_i32, %c0_i32_0 : i32, i32
  }
  func.func @transform_4(%arg0: i32, %arg1: i32) -> (i32, i32) {
    %c0_i32 = arith.constant 0 : i32
    %c0_i32_0 = arith.constant 0 : i32
    %c0_i32_1 = arith.constant 0 : i32
    return %c0_i32, %c0_i32_0 : i32, i32
  }
  func.func @transform_5(%arg0: i32, %arg1: i32) -> (i32, i32) {
    %c0_i32 = arith.constant 0 : i32
    %c0_i32_0 = arith.constant 0 : i32
    %c0_i32_1 = arith.constant 0 : i32
    return %c0_i32, %c0_i32_0 : i32, i32
  }
  func.func @transform_6(%arg0: i32, %arg1: i32) -> (i32, i32, i32) {
    %c0_i32 = arith.constant 0 : i32
    %c0_i32_0 = arith.constant 0 : i32
    %c0_i32_1 = arith.constant 0 : i32
    return %arg0, %c0_i32, %c0_i32_0 : i32, i32, i32
  }
}

</mosaic_0001>

<llo_original>
// kernel: tpu_custom_call.1
$region0: #{tpu_custom_call.1}
  #allocation0 [shape = 'u32[]', space=smem, size = 0x4, offset = 0x4, fixed_abs, tag = 'smem constant byte address 0x4 - core index']
  #allocation1 [shape = 'u32[72,128]{1,0:T(1,128)}', space=vmem, size = 0x9000, scoped, tag = 'internal scratch']
  #allocation2 [shape = 'f32[32,1]{1,0:T(8,128)}', space=vmem, size = 0x4000, scoped, tag = 'scratch operand']
  %s0 = inlined_call_operand.vmem [shape: f32[2,4,256], index: 0, kind: input, shape index: {}]
  %s1 = inlined_call_operand.vmem [shape: f32[32,4], index: 1, kind: input, shape index: {}]
  %s2 = inlined_call_operand.vmem [shape: f32[32,1], index: 2, kind: input, shape index: {}]
  %s3 = inlined_call_operand.vmem [shape: f32[32,128], index: 3, kind: input, shape index: {}]
  %s4 = inlined_call_operand.vmem [shape: f32[8,128], index: 4, kind: input, shape index: {}]
  %s5 = inlined_call_operand.hbm [shape: f32[512,128], index: 5, kind: input, shape index: {}]
  %s6 = inlined_call_operand.hbm [shape: f32[2,2,128], index: 6, kind: output, shape index: {}]
  %s7 = sld [smem:[#allocation0]]
  $region69: #{tpu_custom_call.1} parent=0
    _
  %s9 = ssub.s32 1, %s7
  %s10 = scalar_select 0, %s9, %s7
  $region1: #{tpu_custom_call.1} parent=0
    #allocation3 [shape = 'u8[262144]{0}', space=vmem, size = 0x40000, scoped, tag = 'input window, operand 5, single buffered']
    #allocation4 [shape = 's32[2]{0}', space=sflag, size = 0x8, scoped, tag = 'scoped memory for tpu_custom_call.1']
    #allocation5 [shape = 's32[2]{0}', space=sflag, size = 0x8, scoped, tag = 'scoped memory for tpu_custom_call.1']
    #allocation6 [shape = 'u8[2048]{0}', space=vmem, size = 0x800, scoped, tag = 'output window, operand 0']
    %11 = vsyncpa [#allocation4], 0
    %12 = vsyncpa [#allocation5], 0
    %s13 = scalar_lea.sflag [#allocation5], 1
    %14 = vsyncpa %s13, 0
    loop: start=0, step=1, limit=4
    $region2: #{tpu_custom_call.1} parent=1 // loop_pre_header
      _
    $region3: #{tpu_custom_call.1} parent=1 // loop_header
      %s16 = sphi 0, %s20
      %p17 = scmp.ge.s32.totalorder %s16, 4
      %s23 = sphi 0, %s35
      %s24 = sphi 0, %s31
      %s25 = sphi 0, %s23
      %s26 = sphi 0, %s24
      %s27 = sphi 0, %s25
      %s28 = sphi 0, %s26
      %s40 = sphi 0, %s42
      %s43 = sphi 0, %s40
      %s44 = sphi 0, %s43
      %s60 = sphi 0, %s44
      %s64 = sphi 0, %s64
      %s66 = sphi 0, %s64
      %s67 = sphi 0, %s66
      %s81 = sphi 0, %s67
      %s85 = sphi 0, %s85
      %s87 = sphi 0, %s85
      %s88 = sphi 0, %s87
      %s102 = sphi 0, %s88
      %s106 = sphi 0, %s106
      %s108 = sphi 0, %s106
      %s109 = sphi 0, %s108
      %s123 = sphi 0, %s109
      %s127 = sphi 0, %s127
      %s129 = sphi 0, %s127
      %s130 = sphi 0, %s129
      %s144 = sphi 0, %s130
      %s148 = sphi 0, %s148
      %s150 = sphi 0, %s148
      %s151 = sphi 0, %s150
      %s165 = sphi 0, %s151
      %s171 = sphi 0, %s173
      %s174 = sphi 0, %s171
      %s175 = sphi 0, %s174
      %s191 = sphi 0, %s175
    $region4: #{tpu_custom_call.1} parent=1 // loop_header_branch
      %19 = sbr.rel (%p17) target = $region8
    $region5: #{tpu_custom_call.1} parent=1 // loop_body
      %s21 = ssub.s32 %s16, 1
      %s22 = ssub.s32 %s16, 2
      %s29 = sadd.s32 1, %s24
      %p30 = scmp.ge.s32.totalorder %s29, 1
      %s31 = scalar_select %p30, 0, %s29
      %s32 = sadd.s32 1, %s23
      %s33 = scalar_select %p30, %s32, %s23
      %p34 = scmp.ge.s32.totalorder %s33, 2
      %s35 = scalar_select %p34, 0, %s33
      %s36 = ssub.s32 %s23, %s35
      %s37 = ssub.s32 %s24, %s31
      %s38 = sor.u32 %s36, %s37
      %p39 = scmp.eq.s32.totalorder %s38, 0
      %s41 = sadd.s32 %s40, 1
      %s42 = scalar_select %p39, %s40, %s41
      %p45 = pneg %p39
      %p46 = scmp.eq.s32.totalorder %s16, 1
      %p47 = por %p45, %p46
      %p48 = scmp.ne.s32.totalorder %s40, %s43
      %p49 = scmp.eq.s32.totalorder %s16, 0
      %p50 = por %p48, %p49
      %p51 = scmp.ne.s32.totalorder %s40, %s43
      %p52 = scmp.eq.s32.totalorder %s21, 1
      %p53 = por %p51, %p52
      %p54 = scmp.ne.s32.totalorder %s43, %s44
      %p55 = scmp.eq.s32.totalorder %s21, 0
      %p56 = por %p54, %p55
      %p57 = scmp.ne.s32.totalorder %s43, %s44
      %p58 = scmp.eq.s32.totalorder %s22, 1
      %p59 = por %p57, %p58
      %p61 = scmp.ne.s32.totalorder %s44, %s60
      %p62 = scmp.eq.s32.totalorder %s22, 0
      %p63 = por %p61, %p62
      %s65 = sadd.s32 %s64, 1
      %p68 = scmp.eq.s32.totalorder %s16, 1
      %p69 = scmp.ne.s32.totalorder %s64, %s66
      %p70 = scmp.eq.s32.totalorder %s16, 0
      %p71 = por %p69, %p70
      %p72 = scmp.ne.s32.totalorder %s64, %s66
      %p73 = scmp.eq.s32.totalorder %s21, 1
      %p74 = por %p72, %p73
      %p75 = scmp.ne.s32.totalorder %s66, %s67
      %p76 = scmp.eq.s32.totalorder %s21, 0
      %p77 = por %p75, %p76
      %p78 = scmp.ne.s32.totalorder %s66, %s67
      %p79 = scmp.eq.s32.totalorder %s22, 1
      %p80 = por %p78, %p79
      %p82 = scmp.ne.s32.totalorder %s67, %s81
      %p83 = scmp.eq.s32.totalorder %s22, 0
      %p84 = por %p82, %p83
      %s86 = sadd.s32 %s85, 1
      %p89 = scmp.eq.s32.totalorder %s16, 1
      %p90 = scmp.ne.s32.totalorder %s85, %s87
      %p91 = scmp.eq.s32.totalorder %s16, 0
      %p92 = por %p90, %p91
      %p93 = scmp.ne.s32.totalorder %s85, %s87
      %p94 = scmp.eq.s32.totalorder %s21, 1
      %p95 = por %p93, %p94
      %p96 = scmp.ne.s32.totalorder %s87, %s88
      %p97 = scmp.eq.s32.totalorder %s21, 0
      %p98 = por %p96, %p97
      %p99 = scmp.ne.s32.totalorder %s87, %s88
      %p100 = scmp.eq.s32.totalorder %s22, 1
      %p101 = por %p99, %p100
      %p103 = scmp.ne.s32.totalorder %s88, %s102
      %p104 = scmp.eq.s32.totalorder %s22, 0
      %p105 = por %p103, %p104
      %s107 = sadd.s32 %s106, 1
      %p110 = scmp.eq.s32.totalorder %s16, 1
      %p111 = scmp.ne.s32.totalorder %s106, %s108
      %p112 = scmp.eq.s32.totalorder %s16, 0
      %p113 = por %p111, %p112
      %p114 = scmp.ne.s32.totalorder %s106, %s108
      %p115 = scmp.eq.s32.totalorder %s21, 1
      %p116 = por %p114, %p115
      %p117 = scmp.ne.s32.totalorder %s108, %s109
      %p118 = scmp.eq.s32.totalorder %s21, 0
      %p119 = por %p117, %p118
      %p120 = scmp.ne.s32.totalorder %s108, %s109
      %p121 = scmp.eq.s32.totalorder %s22, 1
      %p122 = por %p120, %p121
      %p124 = scmp.ne.s32.totalorder %s109, %s123
      %p125 = scmp.eq.s32.totalorder %s22, 0
      %p126 = por %p124, %p125
      %s128 = sadd.s32 %s127, 1
      %p131 = scmp.eq.s32.totalorder %s16, 1
      %p132 = scmp.ne.s32.totalorder %s127, %s129
      %p133 = scmp.eq.s32.totalorder %s16, 0
      %p134 = por %p132, %p133
      %p135 = scmp.ne.s32.totalorder %s127, %s129
      %p136 = scmp.eq.s32.totalorder %s21, 1
      %p137 = por %p135, %p136
      %p138 = scmp.ne.s32.totalorder %s129, %s130
      %p139 = scmp.eq.s32.totalorder %s21, 0
      %p140 = por %p138, %p139
      %p141 = scmp.ne.s32.totalorder %s129, %s130
      %p142 = scmp.eq.s32.totalorder %s22, 1
      %p143 = por %p141, %p142
      %p145 = scmp.ne.s32.totalorder %s130, %s144
      %p146 = scmp.eq.s32.totalorder %s22, 0
      %p147 = por %p145, %p146
      %s149 = sadd.s32 %s148, 1
      %p152 = scmp.eq.s32.totalorder %s16, 1
      %p153 = scmp.ne.s32.totalorder %s148, %s150
      %p154 = scmp.eq.s32.totalorder %s16, 0
      %p155 = por %p153, %p154
      %p156 = scmp.ne.s32.totalorder %s148, %s150
      %p157 = scmp.eq.s32.totalorder %s21, 1
      %p158 = por %p156, %p157
      %p159 = scmp.ne.s32.totalorder %s150, %s151
      %p160 = scmp.eq.s32.totalorder %s21, 0
      %p161 = por %p159, %p160
      %p162 = scmp.ne.s32.totalorder %s150, %s151
      %p163 = scmp.eq.s32.totalorder %s22, 1
      %p164 = por %p162, %p163
      %p166 = scmp.ne.s32.totalorder %s151, %s165
      %p167 = scmp.eq.s32.totalorder %s22, 0
      %p168 = por %p166, %p167
      %s169 = ssub.s32 %s23, %s35
      %p170 = scmp.eq.s32.totalorder %s169, 0
      %s172 = sadd.s32 %s171, 1
      %s173 = scalar_select %p170, %s171, %s172
      %p176 = pneg %p170
      %p177 = scmp.eq.s32.totalorder %s16, 1
      %p178 = por %p176, %p177
      %p179 = scmp.ne.s32.totalorder %s171, %s174
      %p180 = scmp.eq.s32.totalorder %s16, 0
      %p181 = por %p179, %p180
      %p182 = scmp.ne.s32.totalorder %s171, %s174
      %p183 = scmp.eq.s32.totalorder %s21, 1
      %p184 = por %p182, %p183
      %p185 = scmp.ne.s32.totalorder %s174, %s175
      %p186 = scmp.eq.s32.totalorder %s21, 0
      %p187 = por %p185, %p186
      %p188 = scmp.ne.s32.totalorder %s174, %s175
      %p189 = scmp.eq.s32.totalorder %s22, 1
      %p190 = por %p188, %p189
      %p192 = scmp.ne.s32.totalorder %s175, %s191
      %p193 = scmp.eq.s32.totalorder %s22, 0
      %p194 = por %p192, %p193
      %p195 = scmp.le.s32.totalorder 1, %s16
      %p196 = scmp.lt.s32.totalorder %s16, 3
      %p197 = pnand %p195, %p196
      %p198 = pneg %p197
      // Predicated region
      $region9: #{tpu_custom_call.1} parent=5 // pred_check
        _
      $region10: #{tpu_custom_call.1} parent=5 // pred_check_branch
        %200 = sbr.rel (%p197) target = $region12
      $region11: #{tpu_custom_call.1} parent=5 // pred_region
        %s201 = ssub.s32 %s16, 1
        // Predicated region
        $region13: #{tpu_custom_call.1} parent=11 // pred_check
          %p202 = pneg %p77
        $region14: #{tpu_custom_call.1} parent=11 // pred_check_branch
          %204 = sbr.rel (%p202) target = $region16
        $region15: #{tpu_custom_call.1} parent=11 // pred_region
          _
        $region16: #{tpu_custom_call.1} parent=11 // pred_fallthru
          _
        // Predicated region
        $region17: #{tpu_custom_call.1} parent=11 // pred_check
          %p205 = pneg %p98
        $region18: #{tpu_custom_call.1} parent=11 // pred_check_branch
          %207 = sbr.rel (%p205) target = $region20
        $region19: #{tpu_custom_call.1} parent=11 // pred_region
          _
        $region20: #{tpu_custom_call.1} parent=11 // pred_fallthru
          _
        // Predicated region
        $region21: #{tpu_custom_call.1} parent=11 // pred_check
          %p208 = pneg %p119
        $region22: #{tpu_custom_call.1} parent=11 // pred_check_branch
          %210 = sbr.rel (%p208) target = $region24
        $region23: #{tpu_custom_call.1} parent=11 // pred_region
          _
        $region24: #{tpu_custom_call.1} parent=11 // pred_fallthru
          _
        // Predicated region
        $region25: #{tpu_custom_call.1} parent=11 // pred_check
          %p211 = pneg %p140
        $region26: #{tpu_custom_call.1} parent=11 // pred_check_branch
          %213 = sbr.rel (%p211) target = $region28
        $region27: #{tpu_custom_call.1} parent=11 // pred_region
          _
        $region28: #{tpu_custom_call.1} parent=11 // pred_fallthru
          _
        // Predicated region
        $region29: #{tpu_custom_call.1} parent=11 // pred_check
          %p214 = pneg %p161
        $region30: #{tpu_custom_call.1} parent=11 // pred_check_branch
          %216 = sbr.rel (%p214) target = $region32
        $region31: #{tpu_custom_call.1} parent=11 // pred_region
          %218 = vsyncadd [#allocation4], 0
          %s219 = sshll.u32 %s5, 4
          %s220 = int_to_ptr.hbm [resolvable:$true] %s219
          %s221 = sshll.u32 [#allocation3], 4
          %s222 = int_to_ptr.vmem [resolvable:$true] %s221
          %227 = dma.hbm_to_vmem [thread:$0]  %s220, 8192, %s222, [#allocation4], 128, 128, 8
        $region32: #{tpu_custom_call.1} parent=11 // pred_fallthru
          _
      $region12: #{tpu_custom_call.1} parent=5 // pred_fallthru
        _
      %p228 = scmp.lt.s32.totalorder %s16, 2
      // Predicated region
      $region33: #{tpu_custom_call.1} parent=5 // pred_check
        %p229 = pneg %p228
      $region34: #{tpu_custom_call.1} parent=5 // pred_check_branch
        %231 = sbr.rel (%p229) target = $region36
      $region35: #{tpu_custom_call.1} parent=5 // pred_region
        // Predicated region
        $region37: #{tpu_custom_call.1} parent=35 // pred_check
          %p232 = pneg %p50
        $region38: #{tpu_custom_call.1} parent=35 // pred_check_branch
          %234 = sbr.rel (%p232) target = $region40
        $region39: #{tpu_custom_call.1} parent=35 // pred_region
          %s235 = smul.u32 2, %s24
          %p236 = scmp.lt.s32.totalorder %s23, 1
          %s237 = scalar_select %p236, %s23, 1
          %p238 = scmp.lt.s32.totalorder %s235, 1
          %s239 = scalar_select %p238, %s235, 1
          %s240 = smul.addr %s237, 2
          %s241 = sadd.s32 %s239, %s240
          %s242 = smul.addr %s241, 4
          %s243 = scalar_lea.vmem %s0, %s242
          %s244 = smul.u32 2, %s24
        $region40: #{tpu_custom_call.1} parent=35 // pred_fallthru
          _
      $region36: #{tpu_custom_call.1} parent=5 // pred_fallthru
        _
      %p245 = scmp.le.s32.totalorder 1, %s16
      %p246 = scmp.lt.s32.totalorder %s16, 3
      %p247 = pnand %p245, %p246
      %p248 = pneg %p247
      // Predicated region
      $region41: #{tpu_custom_call.1} parent=5 // pred_check
        _
      $region42: #{tpu_custom_call.1} parent=5 // pred_check_branch
        %250 = sbr.rel (%p247) target = $region44
      $region43: #{tpu_custom_call.1} parent=5 // pred_region
        %s251 = ssub.s32 %s16, 1
        // Predicated region
        $region45: #{tpu_custom_call.1} parent=43 // pred_check
          %p252 = pneg %p161
        $region46: #{tpu_custom_call.1} parent=43 // pred_check_branch
          %254 = sbr.rel (%p252) target = $region48
        $region47: #{tpu_custom_call.1} parent=43 // pred_region
          %256 = dma.done [#allocation4], 8192
        $region48: #{tpu_custom_call.1} parent=43 // pred_fallthru
          _
        %s257 = smul.u32 2, %s26
        %p258 = scmp.lt.s32.totalorder %s25, 1
        %s259 = scalar_select %p258, %s25, 1
        %p260 = scmp.lt.s32.totalorder %s257, 1
        %s261 = scalar_select %p260, %s257, 1
        %s262 = smul.addr %s259, 2
        %s263 = sadd.s32 %s261, %s262
        %s264 = smul.addr %s263, 4
        %s265 = scalar_lea.vmem %s0, %s264
        %p266 = pneg %p56
        %p267 = pneg %p53
        %p268 = pneg %p77
        %p269 = pneg %p74
        %p270 = pneg %p98
        %p271 = pneg %p95
        %p272 = pneg %p119
        %p273 = pneg %p116
        %p274 = pneg %p140
        %p275 = pneg %p137
        %p276 = pneg %p161
        %p277 = pneg %p158
        %p278 = pneg %p187
        %p279 = pneg %p184
        %s280 = sand.u32 %s174, 1
        %s281 = scalar_lea.sflag [#allocation5], %s280
        %s282 = sand.u32 %s174, 1
        %s283 = smul.addr %s282, 2
        %s284 = scalar_lea.vmem [#allocation6], %s283
        %s285 = smul.u32 2, %s26
        %p286 = scmp.lt.s32.totalorder %s25, 1
        %s287 = scalar_select %p286, %s25, 1
        %p288 = scmp.lt.s32.totalorder %s285, 1
        %s289 = scalar_select %p288, %s285, 1
        %s290 = smul.addr %s287, 2
        %s291 = sadd.s32 %s289, %s290
        %s292 = smul.addr %s291, 4
        %s293 = scalar_lea.vmem %s0, %s292
        %s294 = smul.u32 2, %s26
        %p295 = scmp.eq.s32.totalorder %s26, 0
        // Predicated region
        $region49: #{tpu_custom_call.1} parent=43 // pred_check
          %p296 = pneg %p295
        $region50: #{tpu_custom_call.1} parent=43 // pred_check_branch
          %298 = sbr.rel (%p296) target = $region52
        $region51: #{tpu_custom_call.1} parent=43 // pred_region
          %vm299 = vcmask 7168
          %300 = vst.msk [vmem:[#allocation2] sm:$0xff] %vm299, 0.0
          %301 = vst.msk [vmem:[#allocation2 + $0x8] sm:$0xff] %vm299, 0.0
          %302 = vst.msk [vmem:[#allocation2 + $0x10] sm:$0xff] %vm299, 0.0
          %303 = vst.msk [vmem:[#allocation2 + $0x18] sm:$0xff] %vm299, 0.0
        $region52: #{tpu_custom_call.1} parent=43 // pred_fallthru
          _
        %v304 = vld [vmem:[%s293] sm:$0xff]
        %v305 = vld [vmem:[%s1] sm:$0xff]
        %v306 = vld [vmem:[%s1 + $0x8] sm:$0xff]
        %v307 = vld [vmem:[%s1 + $0x10] sm:$0xff]
        %v308 = vld [vmem:[%s1 + $0x18] sm:$0xff]
        %v309 = vld [vmem:[%s2] sm:$0xff]
        %v310 = vld [vmem:[%s2 + $0x8] sm:$0xff]
        %v311 = vld [vmem:[%s2 + $0x10] sm:$0xff]
        %v312 = vld [vmem:[%s2 + $0x18] sm:$0xff]
        %314 = vset.pattern.permute.xlu0 0
        %315 = vperm.xlu0 %314, %v309
        %v316 = vpop.permute.xlu0 %315
        %319 = vset.pattern.permute.xlu0 0
        %320 = vperm.xlu0 %319, %v310
        %v321 = vpop.permute.xlu0 %320
        %324 = vset.pattern.permute.xlu0 0
        %325 = vperm.xlu0 %324, %v311
        %v326 = vpop.permute.xlu0 %325
        %329 = vset.pattern.permute.xlu0 0
        %330 = vperm.xlu0 %329, %v312
        %v331 = vpop.permute.xlu0 %330
        %334 = vst [vmem:[#allocation1] ss:$2 sm:$0xff] %v304
        %v335 = vld.sshfl [vmem:[#allocation1] sm:$0xff pattern:$0x75316420]
        %v336 = vld.sshfl [vmem:[#allocation1 + $0x8] sm:$0xff pattern:$0x75316420]
        %vm337 = vcmask 31744
        %v339 = vsel %vm337, %v305, 0
        %v342 = vsel %vm337, %v306, 0
        %v345 = vsel %vm337, %v307, 0
        %v348 = vsel %vm337, %v308, 0
        %vm350 = vcmask 1043456
        %v351 = vsel %vm350, %v335, 0
        %v353 = vsel %vm350, %v336, 0
        %355 = vmatpush.msra.mxu0 0.0
        %356 = vmatpush.msra.mxu0 0.0
        %357 = vmatpush.msra.mxu0 0.0
        %358 = vmatpush.msra.mxu0 0.0
        %359 = vmatpush.msra.mxu0 0.0
        %360 = vmatpush.msra.mxu0 0.0
        %361 = vmatpush.msra.mxu0 0.0
        %362 = vmatpush.msra.mxu0 0.0
        %363 = vmatpush.msra.mxu0 0.0
        %364 = vmatpush.msra.mxu0 0.0
        %365 = vmatpush.msra.mxu0 0.0
        %366 = vmatpush.msra.mxu0 0.0
        %367 = vmatpush.msra.mxu0 0.0
        %368 = vmatpush.msra.mxu0 0.0
        %369 = vmatpush.msra.mxu0 0.0
        %370 = vmatpush.msra.mxu0 %v351
        %371 = vmatmul.f32.gmra.mxu0 %v339
        %v372 = vpop.f32.mrf.mxu0
        %v373 = vadd.f32 %v316, %v372
        %374 = vmatmul.f32.gmra.mxu0 %v342
        %v375 = vpop.f32.mrf.mxu0
        %v376 = vadd.f32 %v321, %v375
        %377 = vmatmul.f32.gmra.mxu0 %v345
        %v378 = vpop.f32.mrf.mxu0
        %v379 = vadd.f32 %v326, %v378
        %380 = vmatmul.f32.gmra.mxu0 %v348
        %v381 = vpop.f32.mrf.mxu0
        %v382 = vadd.f32 %v331, %v381
        %383 = vdwg.mxu0
        %384 = vmatpush.msra.mxu0 0.0
        %385 = vmatpush.msra.mxu0 0.0
        %386 = vmatpush.msra.mxu0 0.0
        %387 = vmatpush.msra.mxu0 0.0
        %388 = vmatpush.msra.mxu0 0.0
        %389 = vmatpush.msra.mxu0 0.0
        %390 = vmatpush.msra.mxu0 0.0
        %391 = vmatpush.msra.mxu0 0.0
        %392 = vmatpush.msra.mxu0 0.0
        %393 = vmatpush.msra.mxu0 0.0
        %394 = vmatpush.msra.mxu0 0.0
        %395 = vmatpush.msra.mxu0 0.0
        %396 = vmatpush.msra.mxu0 0.0
        %397 = vmatpush.msra.mxu0 0.0
        %398 = vmatpush.msra.mxu0 0.0
        %399 = vmatpush.msra.mxu0 %v353
        %400 = vmatmul.f32.gmra.mxu0 %v339
        %v401 = vpop.f32.mrf.mxu0
        %v402 = vadd.f32 %v316, %v401
        %403 = vmatmul.f32.gmra.mxu0 %v342
        %v404 = vpop.f32.mrf.mxu0
        %v405 = vadd.f32 %v321, %v404
        %406 = vmatmul.f32.gmra.mxu0 %v345
        %v407 = vpop.f32.mrf.mxu0
        %v408 = vadd.f32 %v326, %v407
        %409 = vmatmul.f32.gmra.mxu0 %v348
        %v410 = vpop.f32.mrf.mxu0
        %v411 = vadd.f32 %v331, %v410
        %412 = vdwg.mxu0
        %v413 = vld [vmem:[#allocation2] sm:$0xff]
        %v414 = vld [vmem:[#allocation2 + $0x8] sm:$0xff]
        %v415 = vld [vmem:[#allocation2 + $0x10] sm:$0xff]
        %v416 = vld [vmem:[#allocation2 + $0x18] sm:$0xff]
        %v417 = vmax.f32 %v373, 0.0
        %v418 = vmax.f32 %v402, 0.0
        %v419 = vmax.f32 %v376, 0.0
        %v420 = vmax.f32 %v405, 0.0
        %v421 = vmax.f32 %v379, 0.0
        %v422 = vmax.f32 %v408, 0.0
        %v423 = vmax.f32 %v382, 0.0
        %v424 = vmax.f32 %v411, 0.0
        %v425 = vadd.f32 %v417, %v418
        %426 = vadd.xlane.f32.xlu0 %v425
        %v427 = vpop.xlane.xlu0 %426
        %v428 = vadd.f32 %v419, %v420
        %429 = vadd.xlane.f32.xlu0 %v428
        %v430 = vpop.xlane.xlu0 %429
        %v431 = vadd.f32 %v421, %v422
        %432 = vadd.xlane.f32.xlu0 %v431
        %v433 = vpop.xlane.xlu0 %432
        %v434 = vadd.f32 %v423, %v424
        %435 = vadd.xlane.f32.xlu0 %v434
        %v436 = vpop.xlane.xlu0 %435
        %v437 = vadd.f32 %v413, %v427
        %v438 = vadd.f32 %v414, %v430
        %v439 = vadd.f32 %v415, %v433
        %v440 = vadd.f32 %v416, %v436
        %vm441 = vcmask 7168
        %442 = vst.msk [vmem:[#allocation2] sm:$0xff] %vm441, %v437
        %443 = vst.msk [vmem:[#allocation2 + $0x8] sm:$0xff] %vm441, %v438
        %444 = vst.msk [vmem:[#allocation2 + $0x10] sm:$0xff] %vm441, %v439
        %445 = vst.msk [vmem:[#allocation2 + $0x18] sm:$0xff] %vm441, %v440
        // Predicated region
        $region53: #{tpu_custom_call.1} parent=43 // pred_check
          %p446 = pneg %p295
        $region54: #{tpu_custom_call.1} parent=43 // pred_check_branch
          %448 = sbr.rel (%p446) target = $region56
        $region55: #{tpu_custom_call.1} parent=43 // pred_region
          %v449 = vld [vmem:[#allocation2] sm:$0xff]
          %v450 = vld [vmem:[#allocation2 + $0x8] sm:$0xff]
          %v451 = vld [vmem:[#allocation2 + $0x10] sm:$0xff]
          %v452 = vld [vmem:[#allocation2 + $0x18] sm:$0xff]
          %v453 = vmul.f32 %v449, 0.00390625
          %v454 = vmul.f32 %v450, 0.00390625
          %v455 = vmul.f32 %v451, 0.00390625
          %v456 = vmul.f32 %v452, 0.00390625
          %v457 = vld [vmem:[%s3] sm:$0xff]
          %v458 = vld [vmem:[%s3 + $0x8] sm:$0xff]
          %v459 = vld [vmem:[%s3 + $0x10] sm:$0xff]
          %v460 = vld [vmem:[%s3 + $0x18] sm:$0xff]
          %462 = vset.pattern.permute.xlu0 0
          %463 = vperm.xlu0 %462, %v453
          %v464 = vpop.permute.xlu0 %463
          %467 = vset.pattern.permute.xlu0 0
          %468 = vperm.xlu0 %467, %v454
          %v469 = vpop.permute.xlu0 %468
          %472 = vset.pattern.permute.xlu0 0
          %473 = vperm.xlu0 %472, %v455
          %v474 = vpop.permute.xlu0 %473
          %477 = vset.pattern.permute.xlu0 0
          %478 = vperm.xlu0 %477, %v456
          %v479 = vpop.permute.xlu0 %478
          %v481 = vmul.f32 %v464, %v457
          %v482 = vmul.f32 %v469, %v458
          %v483 = vmul.f32 %v474, %v459
          %v484 = vmul.f32 %v479, %v460
          %v485 = vadd.f32 %v481, %v482
          %v486 = vadd.f32 %v485, %v483
          %v487 = vadd.f32 %v486, %v484
          %v488 = vrot.slane %v487, 4
          %v489 = vadd.f32 %v487, %v488
          %v490 = vrot.slane %v489, 2
          %v491 = vadd.f32 %v489, %v490
          %v492 = vrot.slane %v491, 1
          %v493 = vadd.f32 %v491, %v492
          %v494 = vld [vmem:[%s4] sm:$0x1]
          %v495 = vadd.f32 %v493, %v494
          %v496 = vmax.f32 %v495, 0.0
          %v497 = vld [vmem:[#allocation3] sm:$0xff]
          %v498 = vld [vmem:[#allocation3 + $0x8] sm:$0xff]
          %v499 = vld [vmem:[#allocation3 + $0x10] sm:$0xff]
          %v500 = vld [vmem:[#allocation3 + $0x18] sm:$0xff]
          %v501 = vld [vmem:[#allocation3 + $0x20] sm:$0xff]
          %v502 = vld [vmem:[#allocation3 + $0x28] sm:$0xff]
          %v503 = vld [vmem:[#allocation3 + $0x30] sm:$0xff]
          %v504 = vld [vmem:[#allocation3 + $0x38] sm:$0xff]
          %v505 = vld [vmem:[#allocation3 + $0x40] sm:$0xff]
          %v506 = vld [vmem:[#allocation3 + $0x48] sm:$0xff]
          %v507 = vld [vmem:[#allocation3 + $0x50] sm:$0xff]
          %v508 = vld [vmem:[#allocation3 + $0x58] sm:$0xff]
          %v509 = vld [vmem:[#allocation3 + $0x60] sm:$0xff]
          %v510 = vld [vmem:[#allocation3 + $0x68] sm:$0xff]
          %v511 = vld [vmem:[#allocation3 + $0x70] sm:$0xff]
          %v512 = vld [vmem:[#allocation3 + $0x78] sm:$0xff]
          %v513 = vld [vmem:[%s4 + $0x1] sm:$0x1]
          %514 = vmatpush.msra.mxu0 %v512
          %515 = vmatpush.msra.mxu0 %v511
          %516 = vmatpush.msra.mxu0 %v510
          %517 = vmatpush.msra.mxu0 %v509
          %518 = vmatpush.msra.mxu0 %v508
          %519 = vmatpush.msra.mxu0 %v507
          %520 = vmatpush.msra.mxu0 %v506
          %521 = vmatpush.msra.mxu0 %v505
          %522 = vmatpush.msra.mxu0 %v504
          %523 = vmatpush.msra.mxu0 %v503
          %524 = vmatpush.msra.mxu0 %v502
          %525 = vmatpush.msra.mxu0 %v501
          %526 = vmatpush.msra.mxu0 %v500
          %527 = vmatpush.msra.mxu0 %v499
          %528 = vmatpush.msra.mxu0 %v498
          %529 = vmatpush.msra.mxu0 %v497
          %530 = vmatmul.f32.gmra.mxu0 %v496
          %v531 = vpop.f32.mrf.mxu0
          %v532 = vadd.f32 %v513, %v531
          %533 = vdwg.mxu0
          %v534 = vmax.f32 %v532, 0.0
          %v535 = vld [vmem:[#allocation3 + $0x80] sm:$0xff]
          %v536 = vld [vmem:[#allocation3 + $0x88] sm:$0xff]
          %v537 = vld [vmem:[#allocation3 + $0x90] sm:$0xff]
          %v538 = vld [vmem:[#allocation3 + $0x98] sm:$0xff]
          %v539 = vld [vmem:[#allocation3 + $0xa0] sm:$0xff]
          %v540 = vld [vmem:[#allocation3 + $0xa8] sm:$0xff]
          %v541 = vld [vmem:[#allocation3 + $0xb0] sm:$0xff]
          %v542 = vld [vmem:[#allocation3 + $0xb8] sm:$0xff]
          %v543 = vld [vmem:[#allocation3 + $0xc0] sm:$0xff]
          %v544 = vld [vmem:[#allocation3 + $0xc8] sm:$0xff]
          %v545 = vld [vmem:[#allocation3 + $0xd0] sm:$0xff]
          %v546 = vld [vmem:[#allocation3 + $0xd8] sm:$0xff]
          %v547 = vld [vmem:[#allocation3 + $0xe0] sm:$0xff]
          %v548 = vld [vmem:[#allocation3 + $0xe8] sm:$0xff]
          %v549 = vld [vmem:[#allocation3 + $0xf0] sm:$0xff]
          %v550 = vld [vmem:[#allocation3 + $0xf8] sm:$0xff]
          %v551 = vld [vmem:[%s4 + $0x2] sm:$0x1]
          %552 = vmatpush.msra.mxu0 %v550
          %553 = vmatpush.msra.mxu0 %v549
          %554 = vmatpush.msra.mxu0 %v548
          %555 = vmatpush.msra.mxu0 %v547
          %556 = vmatpush.msra.mxu0 %v546
          %557 = vmatpush.msra.mxu0 %v545
          %558 = vmatpush.msra.mxu0 %v544
          %559 = vmatpush.msra.mxu0 %v543
          %560 = vmatpush.msra.mxu0 %v542
          %561 = vmatpush.msra.mxu0 %v541
          %562 = vmatpush.msra.mxu0 %v540
          %563 = vmatpush.msra.mxu0 %v539
          %564 = vmatpush.msra.mxu0 %v538
          %565 = vmatpush.msra.mxu0 %v537
          %566 = vmatpush.msra.mxu0 %v536
          %567 = vmatpush.msra.mxu0 %v535
          %568 = vmatmul.f32.gmra.mxu0 %v534
          %v569 = vpop.f32.mrf.mxu0
          %v570 = vadd.f32 %v551, %v569
          %571 = vdwg.mxu0
          %v572 = vld [vmem:[%s4 + $0x4] sm:$0x1]
          %v573 = vadd.f32 %v572, %v570
          %v574 = vld [vmem:[#allocation3 + $0x100] sm:$0xff]
          %v575 = vld [vmem:[#allocation3 + $0x108] sm:$0xff]
          %v576 = vld [vmem:[#allocation3 + $0x110] sm:$0xff]
          %v577 = vld [vmem:[#allocation3 + $0x118] sm:$0xff]
          %v578 = vld [vmem:[#allocation3 + $0x120] sm:$0xff]
          %v579 = vld [vmem:[#allocation3 + $0x128] sm:$0xff]
          %v580 = vld [vmem:[#allocation3 + $0x130] sm:$0xff]
          %v581 = vld [vmem:[#allocation3 + $0x138] sm:$0xff]
          %v582 = vld [vmem:[#allocation3 + $0x140] sm:$0xff]
          %v583 = vld [vmem:[#allocation3 + $0x148] sm:$0xff]
          %v584 = vld [vmem:[#allocation3 + $0x150] sm:$0xff]
          %v585 = vld [vmem:[#allocation3 + $0x158] sm:$0xff]
          %v586 = vld [vmem:[#allocation3 + $0x160] sm:$0xff]
          %v587 = vld [vmem:[#allocation3 + $0x168] sm:$0xff]
          %v588 = vld [vmem:[#allocation3 + $0x170] sm:$0xff]
          %v589 = vld [vmem:[#allocation3 + $0x178] sm:$0xff]
          %590 = vmatpush.msra.mxu0 %v589
          %591 = vmatpush.msra.mxu0 %v588
          %592 = vmatpush.msra.mxu0 %v587
          %593 = vmatpush.msra.mxu0 %v586
          %594 = vmatpush.msra.mxu0 %v585
          %595 = vmatpush.msra.mxu0 %v584
          %596 = vmatpush.msra.mxu0 %v583
          %597 = vmatpush.msra.mxu0 %v582
          %598 = vmatpush.msra.mxu0 %v581
          %599 = vmatpush.msra.mxu0 %v580
          %600 = vmatpush.msra.mxu0 %v579
          %601 = vmatpush.msra.mxu0 %v578
          %602 = vmatpush.msra.mxu0 %v577
          %603 = vmatpush.msra.mxu0 %v576
          %604 = vmatpush.msra.mxu0 %v575
          %605 = vmatpush.msra.mxu0 %v574
          %606 = vmatmul.f32.gmra.mxu0 %v572
          %v607 = vpop.f32.mrf.mxu0
          %v608 = vadd.f32 0.0, %v607
          %609 = vdwg.mxu0
          %v610 = vadd.f32 %v573, %v608
          %v611 = vadd.f32 %v610, %v570
          %612 = vmatpush.msra.mxu0 %v589
          %613 = vmatpush.msra.mxu0 %v588
          %614 = vmatpush.msra.mxu0 %v587
          %615 = vmatpush.msra.mxu0 %v586
          %616 = vmatpush.msra.mxu0 %v585
          %617 = vmatpush.msra.mxu0 %v584
          %618 = vmatpush.msra.mxu0 %v583
          %619 = vmatpush.msra.mxu0 %v582
          %620 = vmatpush.msra.mxu0 %v581
          %621 = vmatpush.msra.mxu0 %v580
          %622 = vmatpush.msra.mxu0 %v579
          %623 = vmatpush.msra.mxu0 %v578
          %624 = vmatpush.msra.mxu0 %v577
          %625 = vmatpush.msra.mxu0 %v576
          %626 = vmatpush.msra.mxu0 %v575
          %627 = vmatpush.msra.mxu0 %v574
          %628 = vmatmul.f32.gmra.mxu0 %v610
          %v629 = vpop.f32.mrf.mxu0
          %v630 = vadd.f32 0.0, %v629
          %631 = vdwg.mxu0
          %v632 = vadd.f32 %v611, %v630
          %v633 = vadd.f32 %v632, %v570
          %634 = vmatpush.msra.mxu0 %v589
          %635 = vmatpush.msra.mxu0 %v588
          %636 = vmatpush.msra.mxu0 %v587
          %637 = vmatpush.msra.mxu0 %v586
          %638 = vmatpush.msra.mxu0 %v585
          %639 = vmatpush.msra.mxu0 %v584
          %640 = vmatpush.msra.mxu0 %v583
          %641 = vmatpush.msra.mxu0 %v582
          %642 = vmatpush.msra.mxu0 %v581
          %643 = vmatpush.msra.mxu0 %v580
          %644 = vmatpush.msra.mxu0 %v579
          %645 = vmatpush.msra.mxu0 %v578
          %646 = vmatpush.msra.mxu0 %v577
          %647 = vmatpush.msra.mxu0 %v576
          %648 = vmatpush.msra.mxu0 %v575
          %649 = vmatpush.msra.mxu0 %v574
          %650 = vmatmul.f32.gmra.mxu0 %v632
          %v651 = vpop.f32.mrf.mxu0
          %v652 = vadd.f32 0.0, %v651
          %653 = vdwg.mxu0
          %v654 = vadd.f32 %v633, %v652
          %v655 = vld [vmem:[#allocation3 + $0x180] sm:$0xff]
          %v656 = vld [vmem:[#allocation3 + $0x188] sm:$0xff]
          %v657 = vld [vmem:[#allocation3 + $0x190] sm:$0xff]
          %v658 = vld [vmem:[#allocation3 + $0x198] sm:$0xff]
          %v659 = vld [vmem:[#allocation3 + $0x1a0] sm:$0xff]
          %v660 = vld [vmem:[#allocation3 + $0x1a8] sm:$0xff]
          %v661 = vld [vmem:[#allocation3 + $0x1b0] sm:$0xff]
          %v662 = vld [vmem:[#allocation3 + $0x1b8] sm:$0xff]
          %v663 = vld [vmem:[#allocation3 + $0x1c0] sm:$0xff]
          %v664 = vld [vmem:[#allocation3 + $0x1c8] sm:$0xff]
          %v665 = vld [vmem:[#allocation3 + $0x1d0] sm:$0xff]
          %v666 = vld [vmem:[#allocation3 + $0x1d8] sm:$0xff]
          %v667 = vld [vmem:[#allocation3 + $0x1e0] sm:$0xff]
          %v668 = vld [vmem:[#allocation3 + $0x1e8] sm:$0xff]
          %v669 = vld [vmem:[#allocation3 + $0x1f0] sm:$0xff]
          %v670 = vld [vmem:[#allocation3 + $0x1f8] sm:$0xff]
          %v671 = vld [vmem:[%s4 + $0x3] sm:$0x1]
          %672 = vmatpush.msra.mxu0 %v670
          %673 = vmatpush.msra.mxu0 %v669
          %674 = vmatpush.msra.mxu0 %v668
          %675 = vmatpush.msra.mxu0 %v667
          %676 = vmatpush.msra.mxu0 %v666
          %677 = vmatpush.msra.mxu0 %v665
          %678 = vmatpush.msra.mxu0 %v664
          %679 = vmatpush.msra.mxu0 %v663
          %680 = vmatpush.msra.mxu0 %v662
          %681 = vmatpush.msra.mxu0 %v661
          %682 = vmatpush.msra.mxu0 %v660
          %683 = vmatpush.msra.mxu0 %v659
          %684 = vmatpush.msra.mxu0 %v658
          %685 = vmatpush.msra.mxu0 %v657
          %686 = vmatpush.msra.mxu0 %v656
          %687 = vmatpush.msra.mxu0 %v655
          %688 = vmatmul.f32.gmra.mxu0 %v534
          %v689 = vpop.f32.mrf.mxu0
          %v690 = vadd.f32 %v671, %v689
          %691 = vdwg.mxu0
          %v692 = vxor.u32 %v690, 2147483648
          %v693 = vmul.f32 %v692, 1.442695
          %v694 = vpow.pop %v693
          %v695 = vadd.f32 %v694, 1.0
          %v696 = vrcp.pop %v695
          %v697 = vmul.f32 %v695, %v696
          %v698 = vsub.f32 1.0, %v697
          %v699 = vmul.f32 %v696, %v698
          %v700 = vadd.f32 %v696, %v699
          %vm701 = vweird.f32 %v695
          %vm702 = vweird.f32 %v696
          %vm703 = vmor %vm701, %vm702
          %v704 = vsel %vm703, %v696, %v700
          %v705 = vand.u32 2147483647, %v695
          %vm706 = vcmp.eq.f32.partialorder %v705, 8.507059e+37
          %v707 = vand.u32 %v695, 2147483648
          %v708 = vor.u32 1.1754944e-38, %v707
          %v709 = vsel %vm706, %v708, %v704
          %v710 = vmul.f32 1.0, %v709
          %v712 = vrot.slane %v710, 7
          %vm714 = vcmask 1040384
          %v715 = vsel %vm714, %v654, %v712
          %716 = vst [vmem:[%s284] sm:$0x3] %v715
        $region56: #{tpu_custom_call.1} parent=43 // pred_fallthru
          _
        %s717 = sand.u32 %s174, 1
        %s718 = scalar_lea.sflag [#allocation5], %s717
        %s719 = sand.u32 %s174, 1
        %s720 = smul.addr %s719, 2
        %s721 = scalar_lea.vmem [#allocation6], %s720
        // Predicated region
        $region57: #{tpu_custom_call.1} parent=43 // pred_check
          %p722 = pneg %p184
        $region58: #{tpu_custom_call.1} parent=43 // pred_check_branch
          %724 = sbr.rel (%p722) target = $region60
        $region59: #{tpu_custom_call.1} parent=43 // pred_region
          %726 = vsyncadd %s718, 0
          %s727 = smul.addr %s25, 2
          %s728 = scalar_lea.hbm %s6, %s727
          %s730 = sshll.u32 %s721, 4
          %s731 = int_to_ptr.vmem [resolvable:$true] %s730
          %s732 = sshll.u32 %s728, 4
          %s733 = int_to_ptr.hbm [resolvable:$true] %s732
          %735 = dma.vmem_to_hbm [thread:$0]  %s731, 32, %s733, %s718
        $region60: #{tpu_custom_call.1} parent=43 // pred_fallthru
          _
      $region44: #{tpu_custom_call.1} parent=5 // pred_fallthru
        _
      %p736 = scmp.le.s32.totalorder 2, %s16
      // Predicated region
      $region61: #{tpu_custom_call.1} parent=5 // pred_check
        %p737 = pneg %p736
      $region62: #{tpu_custom_call.1} parent=5 // pred_check_branch
        %739 = sbr.rel (%p737) target = $region64
      $region63: #{tpu_custom_call.1} parent=5 // pred_region
        %s740 = ssub.s32 %s16, 2
        // Predicated region
        $region65: #{tpu_custom_call.1} parent=63 // pred_check
          %p741 = pneg %p190
        $region66: #{tpu_custom_call.1} parent=63 // pred_check_branch
          %743 = sbr.rel (%p741) target = $region68
        $region67: #{tpu_custom_call.1} parent=63 // pred_region
          %s744 = sand.u32 %s175, 1
          %s745 = scalar_lea.sflag [#allocation5], %s744
          %s746 = sand.u32 %s175, 1
          %s747 = smul.addr %s746, 2
          %s748 = scalar_lea.vmem [#allocation6], %s747
          %750 = dma.done %s745, 32
        $region68: #{tpu_custom_call.1} parent=63 // pred_fallthru
          _
      $region64: #{tpu_custom_call.1} parent=5 // pred_fallthru
        _
    $region6: #{tpu_custom_call.1} parent=1 // loop_footer
      %s20 = sadd.s32 1, %s16
    $region7: #{tpu_custom_call.1} parent=1 // loop_footer_branch
      %15 = sbr.rel target = $region3
    $region8: #{tpu_custom_call.1} parent=1 // loop_exit
      _
    %751 = vsyncpa [#allocation4], 1
    %s752 = scalar_lea.sflag [#allocation4], 1
    %753 = vsyncpa %s752, 1
    %754 = vsyncpa [#allocation5], 1
    %s755 = scalar_lea.sflag [#allocation5], 1
    %756 = vsyncpa %s755, 1

</llo_original>
